<compile_context>
chip_gen: v5e
topology: v5e:2x2
jax: 0.10.0
libtpu: 0.0.40
codegen_flags: <defaults>
</compile_context>

<pallas_src>
import jax
import jax.numpy as jnp
from jax.experimental import pallas as pl
from jax.experimental.pallas import tpu as pltpu


def _round_up(n, m):
    return ((n + m - 1) // m) * m


def _cdiv(a, b):
    return -(-a // b)


def _disc_kernel(x_ref, w1_ref, b1_ref, w2_ref, b2_ref, o_ref):
    # x_ref : (TB, 784) bf16   w1_ref: (784, 128) bf16   b1_ref: (1, 128) f32
    # w2_ref: (1, 128)  f32    b2_ref: (1, 1) f32 (SMEM)  o_ref : (1, TB) f32
    # Big GEMM on the MXU with bf16 operands, f32 accumulation.
    h = jnp.dot(x_ref[...], w1_ref[...], preferred_element_type=jnp.float32)
    h = jnp.maximum(h + b1_ref[...], 0.0)                        # bias + ReLU (f32 VPU)
    # 128 -> 1 projection kept off the MXU: VPU multiply, XLU transpose, sublane reduce.
    # Transposing makes the logits lane-dense so the sigmoid and the store run on dense vregs.
    hw_t = jnp.transpose(h * w2_ref[...])                        # (128, TB)
    logit = jnp.sum(hw_t, axis=0, keepdims=True) + b2_ref[0, 0]  # (1, TB)
    # Exact sigmoid; exp lands on the otherwise idle EUP slot.
    o_ref[...] = 1.0 / (1.0 + jnp.exp(-logit))


def discriminator_forward(x, w1, b1, w2, b2, *, block_b=1024):
    """Forward of the PyTorch Discriminator.
    x: any shape flattening to (B, 784) rows (e.g. (B, 1, 28, 28)).
    Returns (B, 1) float32 = sigmoid(relu(x @ w1 + b1) @ w2 + b2)."""
    # bf16 x in HBM halves the dominant input traffic (kernel is HBM-bound on x).
    x2d = x.reshape(-1, 784).astype(jnp.bfloat16)
    B = x2d.shape[0]

    # --- batch tiling ---
    n_tiles = _cdiv(B, block_b)
    if n_tiles < 2 and B > 16:
        n_tiles = 2                       # v7x: >=2 grid steps so both TensorCores get work
    # Near-even tiles (multiple of 16 sublanes for bf16) so awkward B can't ~double padded work.
    tb = _round_up(_cdiv(B, n_tiles), 16)
    b_pad = _round_up(B, tb)
    grid_n = b_pad // tb
    if b_pad != B:
        x2d = jnp.pad(x2d, ((0, b_pad - B), (0, 0)))

    w1_bf = w1.reshape(784, 128).astype(jnp.bfloat16)
    b1_row = b1.reshape(1, 128).astype(jnp.float32)
    w2_row = w2.reshape(1, 128).astype(jnp.float32)
    b2_s = b2.reshape(1, 1).astype(jnp.float32)

    cost = pl.CostEstimate(
        flops=2 * b_pad * 784 * 128 + 4 * b_pad * 128,
        transcendentals=2 * b_pad,
        bytes_accessed=(b_pad * 784 * 2 + 784 * 128 * 2 + (128 + 128 + 1) * 4 + b_pad * 4),
    )

    out = pl.pallas_call(
        _disc_kernel,
        out_shape=jax.ShapeDtypeStruct((grid_n, tb), jnp.float32),
        grid=(grid_n,),
        in_specs=[
            pl.BlockSpec((tb, 784), lambda i: (i, 0)),          # x tile, auto double-buffered
            pl.BlockSpec((784, 128), lambda i: (0, 0)),         # w1 VMEM-resident across iters
            pl.BlockSpec((1, 128), lambda i: (0, 0)),           # b1 resident
            pl.BlockSpec((1, 128), lambda i: (0, 0)),           # w2 row resident
            pl.BlockSpec(memory_space=pltpu.MemorySpace.SMEM),  # b2 scalar in SMEM
        ],
        out_specs=pl.BlockSpec((1, tb), lambda i: (i, 0)),      # lane-dense logits per tile
        compiler_params=pltpu.CompilerParams(
            # "parallel" lets the runtime shard batch tiles across v7x's 2 TensorCores;
            # it is a plain sequential loop (harmless) on v5e/v6e.
            dimension_semantics=("parallel",),
        ),
        cost_estimate=cost,
    )(x2d, w1_bf, b1_row, w2_row, b2_s)

    return out.reshape(-1)[:B].reshape(B, 1)


def init_params(key):
    # Deterministic init mimicking nn.Linear default (uniform(-1/sqrt(fan_in), 1/sqrt(fan_in))).
    k1, k2, k3, k4 = jax.random.split(key, 4)
    lim1 = 1.0 / jnp.sqrt(784.0)
    lim2 = 1.0 / jnp.sqrt(128.0)
    w1 = jax.random.uniform(k1, (784, 128), jnp.float32, -lim1, lim1)
    b1 = jax.random.uniform(k2, (1, 128), jnp.float32, -lim1, lim1)
    w2 = jax.random.uniform(k3, (128, 1), jnp.float32, -lim2, lim2)
    b2 = jax.random.uniform(k4, (1, 1), jnp.float32, -lim2, lim2)
    return w1, b1, w2, b2


if __name__ == "__main__":
    key = jax.random.PRNGKey(0)
    kx, kp = jax.random.split(key)

    # Small batch of MNIST-like images, NCHW (matches the module's x.view(-1, 784)).
    x = jax.random.normal(kx, (8, 1, 28, 28), dtype=jnp.float32)
    w1, b1, w2, b2 = init_params(kp)

    out = discriminator_forward(x, w1, b1, w2, b2)
    jax.block_until_ready(out)

    # Reference check in plain JAX (same math as the PyTorch module, f32).
    x2d = x.reshape(-1, 784)
    ref = jax.nn.sigmoid(jnp.maximum(x2d @ w1 + b1, 0.0) @ w2 + b2)
    assert out.shape == (8, 1)
    # Tolerance covers the bf16 MXU operands (f32 accumulation); sigmoid itself is exact.
    assert jnp.allclose(out, ref, atol=1e-2, rtol=1e-2), (out, ref)

    print("KERNEL_OK")
</pallas_src>

<mosaic_0001>
module attributes {stable_mosaic.version = 11 : i64} {
  func.func @_disc_kernel(%arg0: i32, %arg1: memref<16x784xbf16, #tpu.memory_space<vmem>>, %arg2: memref<784x128xbf16, #tpu.memory_space<vmem>>, %arg3: memref<1x128xf32, #tpu.memory_space<vmem>>, %arg4: memref<1x128xf32, #tpu.memory_space<vmem>>, %arg5: memref<1x1xf32, #tpu.memory_space<smem>>, %arg6: memref<1x16xf32, #tpu.memory_space<vmem>>) attributes {dimension_semantics = [#tpu.dimension_semantics<parallel>], iteration_bounds = array<i64: 1>, scalar_prefetch = 0 : i64, scratch_operands = 0 : i64, tpu.core_type = #tpu.core_type<tc>, window_params = [{transform_indices = @transform_0, window_bounds = array<i64: 16, 784>}, {pipeline_mode = #tpu.pipeline_mode<synchronous>, transform_indices = @transform_1, window_bounds = array<i64: 784, 128>}, {pipeline_mode = #tpu.pipeline_mode<synchronous>, transform_indices = @transform_2, window_bounds = array<i64: 1, 128>}, {pipeline_mode = #tpu.pipeline_mode<synchronous>, transform_indices = @transform_3, window_bounds = array<i64: 1, 128>}, {transform_indices = @transform_4, window_bounds = array<i64: 1, 1>}, {transform_indices = @transform_5, window_bounds = array<i64: 1, 16>}]} {
    %c0 = arith.constant 0 : index
    %c0_0 = arith.constant 0 : index
    %0 = vector.load %arg1[%c0, %c0_0] : memref<16x784xbf16, #tpu.memory_space<vmem>>, vector<16x784xbf16>
    %c0_1 = arith.constant 0 : index
    %c0_2 = arith.constant 0 : index
    %1 = vector.load %arg2[%c0_1, %c0_2] : memref<784x128xbf16, #tpu.memory_space<vmem>>, vector<784x128xbf16>
    %cst = arith.constant dense<0.000000e+00> : vector<16x128xf32>
    %2 = tpu.matmul %0, %1, %cst {dimension_numbers = #tpu.dot_dimension_numbers<[1], [0], [0], [1], [0, 0, 1, 1], [], []>} : vector<16x784xbf16>, vector<784x128xbf16>, vector<16x128xf32> -> vector<16x128xf32>
    %c0_3 = arith.constant 0 : index
    %c0_4 = arith.constant 0 : index
    %3 = vector.load %arg3[%c0_3, %c0_4] : memref<1x128xf32, #tpu.memory_space<vmem>>, vector<1x128xf32>
    %4 = vector.broadcast %3 : vector<1x128xf32> to vector<16x128xf32>
    %5 = arith.addf %2, %4 : vector<16x128xf32>
    %cst_5 = arith.constant 0.000000e+00 : f32
    %6 = vector.broadcast %cst_5 : f32 to vector<16x128xf32>
    %7 = arith.maximumf %5, %6 : vector<16x128xf32>
    %c0_6 = arith.constant 0 : index
    %c0_7 = arith.constant 0 : index
    %8 = vector.load %arg4[%c0_6, %c0_7] : memref<1x128xf32, #tpu.memory_space<vmem>>, vector<1x128xf32>
    %9 = vector.broadcast %8 : vector<1x128xf32> to vector<16x128xf32>
    %10 = arith.mulf %7, %9 : vector<16x128xf32>
    %11 = tpu.transpose %10, [1, 0] : vector<16x128xf32> -> vector<128x16xf32>
    %cst_8 = arith.constant dense<0.000000e+00> : vector<16xf32>
    %12 = vector.multi_reduction <add>, %11, %cst_8 [0] : vector<128x16xf32> to vector<16xf32>
    %13 = vector.shape_cast %12 : vector<16xf32> to vector<1x16xf32>
    %c0_9 = arith.constant 0 : index
    %c0_10 = arith.constant 0 : index
    %14 = memref.load %arg5[%c0_9, %c0_10] : memref<1x1xf32, #tpu.memory_space<smem>>
    %15 = vector.broadcast %14 : f32 to vector<1x16xf32>
    %16 = arith.addf %13, %15 : vector<1x16xf32>
    %cst_11 = arith.constant 0.000000e+00 : f32
    %17 = vector.broadcast %cst_11 : f32 to vector<1x16xf32>
    %18 = arith.subf %17, %16 : vector<1x16xf32>
    %19 = math.exp %18 : vector<1x16xf32>
    %cst_12 = arith.constant 1.000000e+00 : f32
    %20 = vector.broadcast %cst_12 : f32 to vector<1x16xf32>
    %21 = arith.addf %20, %19 : vector<1x16xf32>
    %cst_13 = arith.constant 1.000000e+00 : f32
    %22 = vector.broadcast %cst_13 : f32 to vector<1x16xf32>
    %23 = arith.divf %22, %21 : vector<1x16xf32>
    %c0_14 = arith.constant 0 : index
    %c0_15 = arith.constant 0 : index
    %24 = vector.load %arg6[%c0_14, %c0_15] : memref<1x16xf32, #tpu.memory_space<vmem>>, vector<1x16xf32>
    tpu.vector_store %arg6[%c0_14, %c0_15], %23 {strides = array<i32>} : memref<1x16xf32, #tpu.memory_space<vmem>>, vector<1x16xf32>,
    return
  }
  func.func @transform_0(%arg0: i32) -> (i32, i32) {
    %c0_i32 = arith.constant 0 : i32
    %c0_i32_0 = arith.constant 0 : i32
    return %arg0, %c0_i32 : i32, i32
  }
  func.func @transform_1(%arg0: i32) -> (i32, i32) {
    %c0_i32 = arith.constant 0 : i32
    %c0_i32_0 = arith.constant 0 : i32
    %c0_i32_1 = arith.constant 0 : i32
    return %c0_i32, %c0_i32_0 : i32, i32
  }
  func.func @transform_2(%arg0: i32) -> (i32, i32) {
    %c0_i32 = arith.constant 0 : i32
    %c0_i32_0 = arith.constant 0 : i32
    %c0_i32_1 = arith.constant 0 : i32
    return %c0_i32, %c0_i32_0 : i32, i32
  }
  func.func @transform_3(%arg0: i32) -> (i32, i32) {
    %c0_i32 = arith.constant 0 : i32
    %c0_i32_0 = arith.constant 0 : i32
    %c0_i32_1 = arith.constant 0 : i32
    return %c0_i32, %c0_i32_0 : i32, i32
  }
  func.func @transform_4(%arg0: i32) -> (i32, i32) {
    %c0_i32 = arith.constant 0 : i32
    %c0_i32_0 = arith.constant 0 : i32
    %c0_i32_1 = arith.constant 0 : i32
    return %c0_i32, %c0_i32_0 : i32, i32
  }
  func.func @transform_5(%arg0: i32) -> (i32, i32) {
    %c0_i32 = arith.constant 0 : i32
    %c0_i32_0 = arith.constant 0 : i32
    return %arg0, %c0_i32 : i32, i32
  }
}

</mosaic_0001>

<llo_original>
// kernel: tpu_custom_call.1
$region0: #{tpu_custom_call.1}
  #allocation0 [shape = 'u32[]', space=smem, size = 0x4, offset = 0x4, fixed_abs, tag = 'smem constant byte address 0x4 - core index']
  #allocation1 [shape = 'u32[72,128]{1,0:T(1,128)}', space=vmem, size = 0x9000, scoped, tag = 'internal scratch']
  #allocation2 [shape = 'f32[1,1]{1,0:T(1,128)S(6)}', space=smem, size = 0x200, scoped, tag = 'scoped memory for tpu_custom_call.1']
  %s0 = inlined_call_operand.hbm [shape: bf16[16,784], index: 0, kind: input, shape index: {}]
  %s1 = inlined_call_operand.hbm [shape: bf16[784,128], index: 1, kind: input, shape index: {}]
  %s2 = inlined_call_operand.vmem [shape: f32[1,128], index: 2, kind: input, shape index: {}]
  %s3 = inlined_call_operand.vmem [shape: f32[1,128], index: 3, kind: input, shape index: {}]
  %s4 = inlined_call_operand.<no memory space> [shape: f32[1,1], index: 4, kind: input, shape index: {}]
  %s5 = inlined_call_operand.hbm [shape: f32[1,16], index: 5, kind: output, shape index: {}]
  %s6 = sld [smem:[#allocation0]]
  $region38: #{tpu_custom_call.1} parent=0
    _
  %s8 = ssub.s32 1, %s6
  %s9 = scalar_select 0, %s8, %s6
  %10 = sst [smem:[#allocation2]] %s4
  $region1: #{tpu_custom_call.1} parent=0
    #allocation3 [shape = 'u8[28672]{0}', space=vmem, size = 0x7000, scoped, tag = 'input window, operand 0, single buffered']
    #allocation4 [shape = 's32[1]{0}', space=sflag, size = 0x4, scoped, tag = 'scoped memory for tpu_custom_call.1']
    #allocation5 [shape = 's32[1]{0}', space=sflag, size = 0x4, scoped, tag = 'scoped memory for tpu_custom_call.1']
    #allocation6 [shape = 'u8[200704]{0}', space=vmem, size = 0x31000, scoped, tag = 'input window, operand 1, single buffered']
    #allocation7 [shape = 's32[1]{0}', space=sflag, size = 0x4, scoped, tag = 'scoped memory for tpu_custom_call.1']
    #allocation8 [shape = 'u8[512]{0}', space=vmem, size = 0x400, scoped, tag = 'output window, operand 0, single buffered']
    %11 = vsyncpa [#allocation4], 0
    %12 = vsyncpa [#allocation7], 0
    %13 = vsyncpa [#allocation5], 0
    // Predicated region
    $region2: #{tpu_custom_call.1} parent=1 // pred_check
      _
    $region3: #{tpu_custom_call.1} parent=1 // pred_check_branch
      %15 = sbr.rel (0) target = $region5
    $region4: #{tpu_custom_call.1} parent=1 // pred_region
      %17 = vsyncadd [#allocation4], 0
      %s18 = sshll.u32 %s0, 4
      %s19 = int_to_ptr.hbm [resolvable:$true] %s18
      %s20 = sshll.u32 [#allocation3], 4
      %s21 = int_to_ptr.vmem [resolvable:$true] %s20
      %26 = dma.hbm_to_vmem [thread:$0]  %s19, 896, %s21, [#allocation4], 448, 448, 28
    $region5: #{tpu_custom_call.1} parent=1 // pred_fallthru
      _
    // Predicated region
    $region6: #{tpu_custom_call.1} parent=1 // pred_check
      _
    $region7: #{tpu_custom_call.1} parent=1 // pred_check_branch
      %28 = sbr.rel (0) target = $region9
    $region8: #{tpu_custom_call.1} parent=1 // pred_region
      %30 = vsyncadd [#allocation7], 0
      %s31 = sshll.u32 %s1, 4
      %s32 = int_to_ptr.hbm [resolvable:$true] %s31
      %s33 = sshll.u32 [#allocation6], 4
      %s34 = int_to_ptr.vmem [resolvable:$true] %s33
      %39 = dma.hbm_to_vmem [thread:$0]  %s32, 6272, %s34, [#allocation7], 64, 64, 4
    $region9: #{tpu_custom_call.1} parent=1 // pred_fallthru
      _
    // Predicated region
    $region10: #{tpu_custom_call.1} parent=1 // pred_check
      _
    $region11: #{tpu_custom_call.1} parent=1 // pred_check_branch
      %41 = sbr.rel (0) target = $region13
    $region12: #{tpu_custom_call.1} parent=1 // pred_region
      _
    $region13: #{tpu_custom_call.1} parent=1 // pred_fallthru
      _
    // Predicated region
    $region14: #{tpu_custom_call.1} parent=1 // pred_check
      _
    $region15: #{tpu_custom_call.1} parent=1 // pred_check_branch
      %43 = sbr.rel (0) target = $region17
    $region16: #{tpu_custom_call.1} parent=1 // pred_region
      _
    $region17: #{tpu_custom_call.1} parent=1 // pred_fallthru
      _
    // Predicated region
    $region18: #{tpu_custom_call.1} parent=1 // pred_check
      _
    $region19: #{tpu_custom_call.1} parent=1 // pred_check_branch
      %45 = sbr.rel (0) target = $region21
    $region20: #{tpu_custom_call.1} parent=1 // pred_region
      _
    $region21: #{tpu_custom_call.1} parent=1 // pred_fallthru
      _
    // Predicated region
    $region22: #{tpu_custom_call.1} parent=1 // pred_check
      _
    $region23: #{tpu_custom_call.1} parent=1 // pred_check_branch
      %47 = sbr.rel (0) target = $region25
    $region24: #{tpu_custom_call.1} parent=1 // pred_region
      %49 = dma.done [#allocation4], 896
    $region25: #{tpu_custom_call.1} parent=1 // pred_fallthru
      _
    // Predicated region
    $region26: #{tpu_custom_call.1} parent=1 // pred_check
      _
    $region27: #{tpu_custom_call.1} parent=1 // pred_check_branch
      %51 = sbr.rel (0) target = $region29
    $region28: #{tpu_custom_call.1} parent=1 // pred_region
      %53 = dma.done [#allocation7], 6272
    $region29: #{tpu_custom_call.1} parent=1 // pred_fallthru
      _
    %v55 = vld [vmem:[#allocation3] sm:$0xff]
    %v56 = vld [vmem:[#allocation3 + $0x8] sm:$0xff]
    %v57 = vld [vmem:[#allocation3 + $0x10] sm:$0xff]
    %v58 = vld [vmem:[#allocation3 + $0x18] sm:$0xf]
    %v59 = vld [vmem:[#allocation3 + $0x1c] sm:$0xff]
    %v60 = vld [vmem:[#allocation3 + $0x24] sm:$0xff]
    %v61 = vld [vmem:[#allocation3 + $0x2c] sm:$0xff]
    %v62 = vld [vmem:[#allocation3 + $0x34] sm:$0xf]
    %v63 = vld [vmem:[#allocation6] sm:$0xf]
    %v64 = vld [vmem:[#allocation6 + $0x4] sm:$0xf]
    %v65 = vld [vmem:[#allocation6 + $0x8] sm:$0xf]
    %v66 = vld [vmem:[#allocation6 + $0xc] sm:$0xf]
    %v67 = vld [vmem:[#allocation6 + $0x10] sm:$0xf]
    %v68 = vld [vmem:[#allocation6 + $0x14] sm:$0xf]
    %v69 = vld [vmem:[#allocation6 + $0x18] sm:$0xf]
    %v70 = vld [vmem:[#allocation6 + $0x1c] sm:$0xf]
    %v71 = vld [vmem:[#allocation6 + $0x20] sm:$0xf]
    %v72 = vld [vmem:[#allocation6 + $0x24] sm:$0xf]
    %v73 = vld [vmem:[#allocation6 + $0x28] sm:$0xf]
    %v74 = vld [vmem:[#allocation6 + $0x2c] sm:$0xf]
    %v75 = vld [vmem:[#allocation6 + $0x30] sm:$0xf]
    %v76 = vld [vmem:[#allocation6 + $0x34] sm:$0xf]
    %v77 = vld [vmem:[#allocation6 + $0x38] sm:$0xf]
    %v78 = vld [vmem:[#allocation6 + $0x3c] sm:$0xf]
    %v79 = vld [vmem:[#allocation6 + $0x40] sm:$0xf]
    %v80 = vld [vmem:[#allocation6 + $0x44] sm:$0xf]
    %v81 = vld [vmem:[#allocation6 + $0x48] sm:$0xf]
    %v82 = vld [vmem:[#allocation6 + $0x4c] sm:$0xf]
    %v83 = vld [vmem:[#allocation6 + $0x50] sm:$0xf]
    %v84 = vld [vmem:[#allocation6 + $0x54] sm:$0xf]
    %v85 = vld [vmem:[#allocation6 + $0x58] sm:$0xf]
    %v86 = vld [vmem:[#allocation6 + $0x5c] sm:$0xf]
    %v87 = vld [vmem:[#allocation6 + $0x60] sm:$0xf]
    %v88 = vld [vmem:[#allocation6 + $0x64] sm:$0xf]
    %v89 = vld [vmem:[#allocation6 + $0x68] sm:$0xf]
    %v90 = vld [vmem:[#allocation6 + $0x6c] sm:$0xf]
    %v91 = vld [vmem:[#allocation6 + $0x70] sm:$0xf]
    %v92 = vld [vmem:[#allocation6 + $0x74] sm:$0xf]
    %v93 = vld [vmem:[#allocation6 + $0x78] sm:$0xf]
    %v94 = vld [vmem:[#allocation6 + $0x7c] sm:$0xf]
    %v95 = vld [vmem:[#allocation6 + $0x80] sm:$0xf]
    %v96 = vld [vmem:[#allocation6 + $0x84] sm:$0xf]
    %v97 = vld [vmem:[#allocation6 + $0x88] sm:$0xf]
    %v98 = vld [vmem:[#allocation6 + $0x8c] sm:$0xf]
    %v99 = vld [vmem:[#allocation6 + $0x90] sm:$0xf]
    %v100 = vld [vmem:[#allocation6 + $0x94] sm:$0xf]
    %v101 = vld [vmem:[#allocation6 + $0x98] sm:$0xf]
    %v102 = vld [vmem:[#allocation6 + $0x9c] sm:$0xf]
    %v103 = vld [vmem:[#allocation6 + $0xa0] sm:$0xf]
    %v104 = vld [vmem:[#allocation6 + $0xa4] sm:$0xf]
    %v105 = vld [vmem:[#allocation6 + $0xa8] sm:$0xf]
    %v106 = vld [vmem:[#allocation6 + $0xac] sm:$0xf]
    %v107 = vld [vmem:[#allocation6 + $0xb0] sm:$0xf]
    %v108 = vld [vmem:[#allocation6 + $0xb4] sm:$0xf]
    %v109 = vld [vmem:[#allocation6 + $0xb8] sm:$0xf]
    %v110 = vld [vmem:[#allocation6 + $0xbc] sm:$0xf]
    %v111 = vld [vmem:[#allocation6 + $0xc0] sm:$0xf]
    %v112 = vld [vmem:[#allocation6 + $0xc4] sm:$0xf]
    %v113 = vld [vmem:[#allocation6 + $0xc8] sm:$0xf]
    %v114 = vld [vmem:[#allocation6 + $0xcc] sm:$0xf]
    %v115 = vld [vmem:[#allocation6 + $0xd0] sm:$0xf]
    %v116 = vld [vmem:[#allocation6 + $0xd4] sm:$0xf]
    %v117 = vld [vmem:[#allocation6 + $0xd8] sm:$0xf]
    %v118 = vld [vmem:[#allocation6 + $0xdc] sm:$0xf]
    %v119 = vld [vmem:[#allocation6 + $0xe0] sm:$0xf]
    %v120 = vld [vmem:[#allocation6 + $0xe4] sm:$0xf]
    %v121 = vld [vmem:[#allocation6 + $0xe8] sm:$0xf]
    %v122 = vld [vmem:[#allocation6 + $0xec] sm:$0xf]
    %v123 = vld [vmem:[#allocation6 + $0xf0] sm:$0xf]
    %v124 = vld [vmem:[#allocation6 + $0xf4] sm:$0xf]
    %v125 = vld [vmem:[#allocation6 + $0xf8] sm:$0xf]
    %v126 = vld [vmem:[#allocation6 + $0xfc] sm:$0xf]
    %v127 = vld [vmem:[#allocation6 + $0x100] sm:$0xf]
    %v128 = vld [vmem:[#allocation6 + $0x104] sm:$0xf]
    %v129 = vld [vmem:[#allocation6 + $0x108] sm:$0xf]
    %v130 = vld [vmem:[#allocation6 + $0x10c] sm:$0xf]
    %v131 = vld [vmem:[#allocation6 + $0x110] sm:$0xf]
    %v132 = vld [vmem:[#allocation6 + $0x114] sm:$0xf]
    %v133 = vld [vmem:[#allocation6 + $0x118] sm:$0xf]
    %v134 = vld [vmem:[#allocation6 + $0x11c] sm:$0xf]
    %v135 = vld [vmem:[#allocation6 + $0x120] sm:$0xf]
    %v136 = vld [vmem:[#allocation6 + $0x124] sm:$0xf]
    %v137 = vld [vmem:[#allocation6 + $0x128] sm:$0xf]
    %v138 = vld [vmem:[#allocation6 + $0x12c] sm:$0xf]
    %v139 = vld [vmem:[#allocation6 + $0x130] sm:$0xf]
    %v140 = vld [vmem:[#allocation6 + $0x134] sm:$0xf]
    %v141 = vld [vmem:[#allocation6 + $0x138] sm:$0xf]
    %v142 = vld [vmem:[#allocation6 + $0x13c] sm:$0xf]
    %v143 = vld [vmem:[#allocation6 + $0x140] sm:$0xf]
    %v144 = vld [vmem:[#allocation6 + $0x144] sm:$0xf]
    %v145 = vld [vmem:[#allocation6 + $0x148] sm:$0xf]
    %v146 = vld [vmem:[#allocation6 + $0x14c] sm:$0xf]
    %v147 = vld [vmem:[#allocation6 + $0x150] sm:$0xf]
    %v148 = vld [vmem:[#allocation6 + $0x154] sm:$0xf]
    %v149 = vld [vmem:[#allocation6 + $0x158] sm:$0xf]
    %v150 = vld [vmem:[#allocation6 + $0x15c] sm:$0xf]
    %v151 = vld [vmem:[#allocation6 + $0x160] sm:$0xf]
    %v152 = vld [vmem:[#allocation6 + $0x164] sm:$0xf]
    %v153 = vld [vmem:[#allocation6 + $0x168] sm:$0xf]
    %v154 = vld [vmem:[#allocation6 + $0x16c] sm:$0xf]
    %v155 = vld [vmem:[#allocation6 + $0x170] sm:$0xf]
    %v156 = vld [vmem:[#allocation6 + $0x174] sm:$0xf]
    %v157 = vld [vmem:[#allocation6 + $0x178] sm:$0xf]
    %v158 = vld [vmem:[#allocation6 + $0x17c] sm:$0xf]
    %v159 = vld [vmem:[#allocation6 + $0x180] sm:$0xf]
    %v160 = vld [vmem:[#allocation6 + $0x184] sm:$0xf]
    %v161 = vld [vmem:[%s2] sm:$0x1]
    %v163 = vperm.slane %v161, 0
    %v173 = vunpack.c.l.b16 %v55
    %v174 = vunpack.c.h.b16 %v55
    %v175 = vunpack.c.l.b16 %v56
    %v176 = vunpack.c.h.b16 %v56
    %v177 = vunpack.c.l.b16 %v57
    %v178 = vunpack.c.h.b16 %v57
    %v179 = vunpack.c.l.b16 %v58
    %v180 = vunpack.c.l.b16 %v59
    %v181 = vunpack.c.h.b16 %v59
    %v182 = vunpack.c.l.b16 %v60
    %v183 = vunpack.c.h.b16 %v60
    %v184 = vunpack.c.l.b16 %v61
    %v185 = vunpack.c.h.b16 %v61
    %v186 = vunpack.c.l.b16 %v62
    %v187 = vpack.c.b16 %v180, %v173
    %v188 = vpack.c.b16 %v181, %v174
    %v189 = vpack.c.b16 %v182, %v175
    %v190 = vpack.c.b16 %v183, %v176
    %v191 = vpack.c.b16 %v184, %v177
    %v192 = vpack.c.b16 %v185, %v178
    %v193 = vpack.c.b16 %v186, %v179
    %v298 = vunpack.c.l.b16 %v63
    %v299 = vunpack.c.l.b16 %v64
    %v300 = vunpack.c.l.b16 %v65
    %v301 = vunpack.c.l.b16 %v66
    %v302 = vunpack.c.l.b16 %v67
    %v303 = vunpack.c.l.b16 %v68
    %v304 = vunpack.c.l.b16 %v69
    %v305 = vunpack.c.l.b16 %v70
    %v306 = vunpack.c.l.b16 %v71
    %v307 = vunpack.c.l.b16 %v72
    %v308 = vunpack.c.l.b16 %v73
    %v309 = vunpack.c.l.b16 %v74
    %v310 = vunpack.c.l.b16 %v75
    %v311 = vunpack.c.l.b16 %v76
    %v312 = vunpack.c.l.b16 %v77
    %v313 = vunpack.c.l.b16 %v78
    %v314 = vunpack.c.l.b16 %v79
    %v315 = vunpack.c.l.b16 %v80
    %v316 = vunpack.c.l.b16 %v81
    %v317 = vunpack.c.l.b16 %v82
    %v318 = vunpack.c.l.b16 %v83
    %v319 = vunpack.c.l.b16 %v84
    %v320 = vunpack.c.l.b16 %v85
    %v321 = vunpack.c.l.b16 %v86
    %v322 = vunpack.c.l.b16 %v87
    %v323 = vunpack.c.l.b16 %v88
    %v324 = vunpack.c.l.b16 %v89
    %v325 = vunpack.c.l.b16 %v90
    %v326 = vunpack.c.l.b16 %v91
    %v327 = vunpack.c.l.b16 %v92
    %v328 = vunpack.c.l.b16 %v93
    %v329 = vunpack.c.l.b16 %v94
    %v330 = vunpack.c.l.b16 %v95
    %v331 = vunpack.c.l.b16 %v96
    %v332 = vunpack.c.l.b16 %v97
    %v333 = vunpack.c.l.b16 %v98
    %v334 = vunpack.c.l.b16 %v99
    %v335 = vunpack.c.l.b16 %v100
    %v336 = vunpack.c.l.b16 %v101
    %v337 = vunpack.c.l.b16 %v102
    %v338 = vunpack.c.l.b16 %v103
    %v339 = vunpack.c.l.b16 %v104
    %v340 = vunpack.c.l.b16 %v105
    %v341 = vunpack.c.l.b16 %v106
    %v342 = vunpack.c.l.b16 %v107
    %v343 = vunpack.c.l.b16 %v108
    %v344 = vunpack.c.l.b16 %v109
    %v345 = vunpack.c.l.b16 %v110
    %v346 = vunpack.c.l.b16 %v111
    %v347 = vunpack.c.l.b16 %v112
    %v348 = vunpack.c.l.b16 %v113
    %v349 = vunpack.c.l.b16 %v114
    %v350 = vunpack.c.l.b16 %v115
    %v351 = vunpack.c.l.b16 %v116
    %v352 = vunpack.c.l.b16 %v117
    %v353 = vunpack.c.l.b16 %v118
    %v354 = vunpack.c.l.b16 %v119
    %v355 = vunpack.c.l.b16 %v120
    %v356 = vunpack.c.l.b16 %v121
    %v357 = vunpack.c.l.b16 %v122
    %v358 = vunpack.c.l.b16 %v123
    %v359 = vunpack.c.l.b16 %v124
    %v360 = vunpack.c.l.b16 %v125
    %v361 = vunpack.c.l.b16 %v126
    %v362 = vunpack.c.l.b16 %v127
    %v363 = vunpack.c.l.b16 %v128
    %v364 = vunpack.c.l.b16 %v129
    %v365 = vunpack.c.l.b16 %v130
    %v366 = vunpack.c.l.b16 %v131
    %v367 = vunpack.c.l.b16 %v132
    %v368 = vunpack.c.l.b16 %v133
    %v369 = vunpack.c.l.b16 %v134
    %v370 = vunpack.c.l.b16 %v135
    %v371 = vunpack.c.l.b16 %v136
    %v372 = vunpack.c.l.b16 %v137
    %v373 = vunpack.c.l.b16 %v138
    %v374 = vunpack.c.l.b16 %v139
    %v375 = vunpack.c.l.b16 %v140
    %v376 = vunpack.c.l.b16 %v141
    %v377 = vunpack.c.l.b16 %v142
    %v378 = vunpack.c.l.b16 %v143
    %v379 = vunpack.c.l.b16 %v144
    %v380 = vunpack.c.l.b16 %v145
    %v381 = vunpack.c.l.b16 %v146
    %v382 = vunpack.c.l.b16 %v147
    %v383 = vunpack.c.l.b16 %v148
    %v384 = vunpack.c.l.b16 %v149
    %v385 = vunpack.c.l.b16 %v150
    %v386 = vunpack.c.l.b16 %v151
    %v387 = vunpack.c.l.b16 %v152
    %v388 = vunpack.c.l.b16 %v153
    %v389 = vunpack.c.l.b16 %v154
    %v390 = vunpack.c.l.b16 %v155
    %v391 = vunpack.c.l.b16 %v156
    %v392 = vunpack.c.l.b16 %v157
    %v393 = vunpack.c.l.b16 %v158
    %v394 = vunpack.c.l.b16 %v159
    %v395 = vunpack.c.l.b16 %v160
    %v396 = vpack.c.b16 %v299, %v298
    %v397 = vpack.c.b16 %v301, %v300
    %v398 = vpack.c.b16 %v303, %v302
    %v399 = vpack.c.b16 %v305, %v304
    %v400 = vpack.c.b16 %v307, %v306
    %v401 = vpack.c.b16 %v309, %v308
    %v402 = vpack.c.b16 %v311, %v310
    %v403 = vpack.c.b16 %v313, %v312
    %v404 = vpack.c.b16 %v315, %v314
    %v405 = vpack.c.b16 %v317, %v316
    %v406 = vpack.c.b16 %v319, %v318
    %v407 = vpack.c.b16 %v321, %v320
    %v408 = vpack.c.b16 %v323, %v322
    %v409 = vpack.c.b16 %v325, %v324
    %v410 = vpack.c.b16 %v327, %v326
    %v411 = vpack.c.b16 %v329, %v328
    %v412 = vpack.c.b16 %v331, %v330
    %v413 = vpack.c.b16 %v333, %v332
    %v414 = vpack.c.b16 %v335, %v334
    %v415 = vpack.c.b16 %v337, %v336
    %v416 = vpack.c.b16 %v339, %v338
    %v417 = vpack.c.b16 %v341, %v340
    %v418 = vpack.c.b16 %v343, %v342
    %v419 = vpack.c.b16 %v345, %v344
    %v420 = vpack.c.b16 %v347, %v346
    %v421 = vpack.c.b16 %v349, %v348
    %v422 = vpack.c.b16 %v351, %v350
    %v423 = vpack.c.b16 %v353, %v352
    %v424 = vpack.c.b16 %v355, %v354
    %v425 = vpack.c.b16 %v357, %v356
    %v426 = vpack.c.b16 %v359, %v358
    %v427 = vpack.c.b16 %v361, %v360
    %v428 = vpack.c.b16 %v363, %v362
    %v429 = vpack.c.b16 %v365, %v364
    %v430 = vpack.c.b16 %v367, %v366
    %v431 = vpack.c.b16 %v369, %v368
    %v432 = vpack.c.b16 %v371, %v370
    %v433 = vpack.c.b16 %v373, %v372
    %v434 = vpack.c.b16 %v375, %v374
    %v435 = vpack.c.b16 %v377, %v376
    %v436 = vpack.c.b16 %v379, %v378
    %v437 = vpack.c.b16 %v381, %v380
    %v438 = vpack.c.b16 %v383, %v382
    %v439 = vpack.c.b16 %v385, %v384
    %v440 = vpack.c.b16 %v387, %v386
    %v441 = vpack.c.b16 %v389, %v388
    %v442 = vpack.c.b16 %v391, %v390
    %v443 = vpack.c.b16 %v393, %v392
    %v444 = vpack.c.b16 %v395, %v394
    %vm494 = vcmask 130048
    %v496 = vsel %vm494, %v193, 0
    %498 = vmatpush.bf16.msra.mxu0 %v403
    %499 = vmatpush.bf16.msra.mxu0 %v402
    %500 = vmatpush.bf16.msra.mxu0 %v401
    %501 = vmatpush.bf16.msra.mxu0 %v400
    %502 = vmatpush.bf16.msra.mxu0 %v399
    %503 = vmatpush.bf16.msra.mxu0 %v398
    %504 = vmatpush.bf16.msra.mxu0 %v397
    %505 = vmatpush.bf16.msra.mxu0 %v396
    %506 = vmatmul.bf16.gmra.mxu0 %v187
    %v507 = vpop.f32.mrf.mxu0
    %v508 = vadd.f32 %v163, %v507
    %v509 = vpop.f32.mrf.mxu0
    %v510 = vadd.f32 %v163, %v509
    %511 = vdwg.mxu0
    %512 = vmatpush.bf16.msra.mxu0 %v411
    %513 = vmatpush.bf16.msra.mxu0 %v410
    %514 = vmatpush.bf16.msra.mxu0 %v409
    %515 = vmatpush.bf16.msra.mxu0 %v408
    %516 = vmatpush.bf16.msra.mxu0 %v407
    %517 = vmatpush.bf16.msra.mxu0 %v406
    %518 = vmatpush.bf16.msra.mxu0 %v405
    %519 = vmatpush.bf16.msra.mxu0 %v404
    %520 = vmatmul.bf16.gmra.mxu0 %v188
    %v521 = vpop.f32.mrf.mxu0
    %v522 = vadd.f32 %v508, %v521
    %v523 = vpop.f32.mrf.mxu0
    %v524 = vadd.f32 %v510, %v523
    %525 = vdwg.mxu0
    %526 = vmatpush.bf16.msra.mxu0 %v419
    %527 = vmatpush.bf16.msra.mxu0 %v418
    %528 = vmatpush.bf16.msra.mxu0 %v417
    %529 = vmatpush.bf16.msra.mxu0 %v416
    %530 = vmatpush.bf16.msra.mxu0 %v415
    %531 = vmatpush.bf16.msra.mxu0 %v414
    %532 = vmatpush.bf16.msra.mxu0 %v413
    %533 = vmatpush.bf16.msra.mxu0 %v412
    %534 = vmatmul.bf16.gmra.mxu0 %v189
    %v535 = vpop.f32.mrf.mxu0
    %v536 = vadd.f32 %v522, %v535
    %v537 = vpop.f32.mrf.mxu0
    %v538 = vadd.f32 %v524, %v537
    %539 = vdwg.mxu0
    %540 = vmatpush.bf16.msra.mxu0 %v427
    %541 = vmatpush.bf16.msra.mxu0 %v426
    %542 = vmatpush.bf16.msra.mxu0 %v425
    %543 = vmatpush.bf16.msra.mxu0 %v424
    %544 = vmatpush.bf16.msra.mxu0 %v423
    %545 = vmatpush.bf16.msra.mxu0 %v422
    %546 = vmatpush.bf16.msra.mxu0 %v421
    %547 = vmatpush.bf16.msra.mxu0 %v420
    %548 = vmatmul.bf16.gmra.mxu0 %v190
    %v549 = vpop.f32.mrf.mxu0
    %v550 = vadd.f32 %v536, %v549
    %v551 = vpop.f32.mrf.mxu0
    %v552 = vadd.f32 %v538, %v551
    %553 = vdwg.mxu0
    %554 = vmatpush.bf16.msra.mxu0 %v435
    %555 = vmatpush.bf16.msra.mxu0 %v434
    %556 = vmatpush.bf16.msra.mxu0 %v433
    %557 = vmatpush.bf16.msra.mxu0 %v432
    %558 = vmatpush.bf16.msra.mxu0 %v431
    %559 = vmatpush.bf16.msra.mxu0 %v430
    %560 = vmatpush.bf16.msra.mxu0 %v429
    %561 = vmatpush.bf16.msra.mxu0 %v428
    %562 = vmatmul.bf16.gmra.mxu0 %v191
    %v563 = vpop.f32.mrf.mxu0
    %v564 = vadd.f32 %v550, %v563
    %v565 = vpop.f32.mrf.mxu0
    %v566 = vadd.f32 %v552, %v565
    %567 = vdwg.mxu0
    %568 = vmatpush.bf16.msra.mxu0 %v443
    %569 = vmatpush.bf16.msra.mxu0 %v442
    %570 = vmatpush.bf16.msra.mxu0 %v441
    %571 = vmatpush.bf16.msra.mxu0 %v440
    %572 = vmatpush.bf16.msra.mxu0 %v439
    %573 = vmatpush.bf16.msra.mxu0 %v438
    %574 = vmatpush.bf16.msra.mxu0 %v437
    %575 = vmatpush.bf16.msra.mxu0 %v436
    %576 = vmatmul.bf16.gmra.mxu0 %v192
    %v577 = vpop.f32.mrf.mxu0
    %v578 = vadd.f32 %v564, %v577
    %v579 = vpop.f32.mrf.mxu0
    %v580 = vadd.f32 %v566, %v579
    %581 = vdwg.mxu0
    %582 = vmatpush.bf16.msra.mxu0 0
    %583 = vmatpush.bf16.msra.mxu0 0
    %584 = vmatpush.bf16.msra.mxu0 0
    %585 = vmatpush.bf16.msra.mxu0 0
    %586 = vmatpush.bf16.msra.mxu0 0
    %587 = vmatpush.bf16.msra.mxu0 0
    %588 = vmatpush.bf16.msra.mxu0 0
    %589 = vmatpush.bf16.msra.mxu0 %v444
    %590 = vmatmul.bf16.gmra.mxu0 %v496
    %v591 = vpop.f32.mrf.mxu0
    %v592 = vadd.f32 %v578, %v591
    %v593 = vpop.f32.mrf.mxu0
    %v594 = vadd.f32 %v580, %v593
    %595 = vdwg.mxu0
    %v596 = vmax.f32 %v592, 0.0
    %v597 = vmax.f32 %v594, 0.0
    %v598 = vld [vmem:[%s3] sm:$0x1]
    %v600 = vperm.slane %v598, 0
    %v602 = vmul.f32 %v596, %v600
    %v603 = vmul.f32 %v597, %v600
    %604 = vxpose.xlu0.b32.start [1/16] %v602, 128
    %605 = vxpose.xlu0.b32.cont [2/16] %v603, 128
    %606 = vxpose.xlu0.b32.cont [3/16] 0.0, 128
    %607 = vxpose.xlu0.b32.cont [4/16] 0.0, 128
    %608 = vxpose.xlu0.b32.cont [5/16] 0.0, 128
    %609 = vxpose.xlu0.b32.cont [6/16] 0.0, 128
    %610 = vxpose.xlu0.b32.cont [7/16] 0.0, 128
    %611 = vxpose.xlu0.b32.cont [8/16] 0.0, 128
    %612 = vxpose.xlu0.b32.cont [9/16] 0.0, 128
    %613 = vxpose.xlu0.b32.cont [10/16] 0.0, 128
    %614 = vxpose.xlu0.b32.cont [11/16] 0.0, 128
    %615 = vxpose.xlu0.b32.cont [12/16] 0.0, 128
    %616 = vxpose.xlu0.b32.cont [13/16] 0.0, 128
    %617 = vxpose.xlu0.b32.cont [14/16] 0.0, 128
    %618 = vxpose.xlu0.b32.cont [15/16] 0.0, 128
    %619 = vxpose.xlu0.b32.end [16/16] 0.0, 128
    %v620 = vpop.trf.xlu0
    %v621 = vpop.trf.xlu0
    %v622 = vpop.trf.xlu0
    %v623 = vpop.trf.xlu0
    %v624 = vpop.trf.xlu0
    %v625 = vpop.trf.xlu0
    %v626 = vpop.trf.xlu0
    %v627 = vpop.trf.xlu0
    %v628 = vpop.trf.xlu0
    %v629 = vpop.trf.xlu0
    %v630 = vpop.trf.xlu0
    %v631 = vpop.trf.xlu0
    %v632 = vpop.trf.xlu0
    %v633 = vpop.trf.xlu0
    %v634 = vpop.trf.xlu0
    %v635 = vpop.trf.xlu0
    %v636 = vsel %vm494, %v620, 0.0
    %v637 = vsel %vm494, %v621, 0.0
    %v638 = vadd.f32 %v636, %v637
    %v639 = vsel %vm494, %v622, 0.0
    %v640 = vadd.f32 %v638, %v639
    %v641 = vsel %vm494, %v623, 0.0
    %v642 = vadd.f32 %v640, %v641
    %v643 = vsel %vm494, %v624, 0.0
    %v644 = vadd.f32 %v642, %v643
    %v645 = vsel %vm494, %v625, 0.0
    %v646 = vadd.f32 %v644, %v645
    %v647 = vsel %vm494, %v626, 0.0
    %v648 = vadd.f32 %v646, %v647
    %v649 = vsel %vm494, %v627, 0.0
    %v650 = vadd.f32 %v648, %v649
    %v651 = vsel %vm494, %v628, 0.0
    %v652 = vadd.f32 %v650, %v651
    %v653 = vsel %vm494, %v629, 0.0
    %v654 = vadd.f32 %v652, %v653
    %v655 = vsel %vm494, %v630, 0.0
    %v656 = vadd.f32 %v654, %v655
    %v657 = vsel %vm494, %v631, 0.0
    %v658 = vadd.f32 %v656, %v657
    %v659 = vsel %vm494, %v632, 0.0
    %v660 = vadd.f32 %v658, %v659
    %v661 = vsel %vm494, %v633, 0.0
    %v662 = vadd.f32 %v660, %v661
    %v663 = vsel %vm494, %v634, 0.0
    %v664 = vadd.f32 %v662, %v663
    %v665 = vsel %vm494, %v635, 0.0
    %v666 = vadd.f32 %v664, %v665
    %v667 = vrot.slane %v666, 4
    %v668 = vadd.f32 %v666, %v667
    %v669 = vrot.slane %v668, 2
    %v670 = vadd.f32 %v668, %v669
    %v671 = vrot.slane %v670, 1
    %v672 = vadd.f32 %v670, %v671
    %s673 = sld [smem:[#allocation2]]
    %v674 = vstv %s673
    %v675 = vadd.f32 %v672, %v674
    %v676 = vsub.f32 0.0, %v675
    %v677 = vmul.f32 %v676, 1.442695
    %v678 = vpow.pop %v677
    %v679 = vadd.f32 %v678, 1.0
    %v680 = vrcp.pop %v679
    %v681 = vmul.f32 %v679, %v680
    %v682 = vsub.f32 1.0, %v681
    %v683 = vmul.f32 %v680, %v682
    %v684 = vadd.f32 %v680, %v683
    %vm685 = vweird.f32 %v679
    %vm686 = vweird.f32 %v680
    %vm687 = vmor %vm685, %vm686
    %v688 = vsel %vm687, %v680, %v684
    %v689 = vand.u32 2147483647, %v679
    %vm690 = vcmp.eq.f32.partialorder %v689, 8.507059e+37
    %v691 = vand.u32 %v679, 2147483648
    %v692 = vor.u32 1.1754944e-38, %v691
    %v693 = vsel %vm690, %v692, %v688
    %v694 = vmul.f32 1.0, %v693
    %vm695 = vcmask 122880
    %696 = vst.msk [vmem:[#allocation8] sm:$0x1] %vm695, %v694
    // Predicated region
    $region30: #{tpu_custom_call.1} parent=1 // pred_check
      _
    $region31: #{tpu_custom_call.1} parent=1 // pred_check_branch
      %698 = sbr.rel (0) target = $region33
    $region32: #{tpu_custom_call.1} parent=1 // pred_region
      %700 = vsyncadd [#allocation5], 0
      %s702 = sshll.u32 [#allocation8], 4
      %s703 = int_to_ptr.vmem [resolvable:$true] %s702
      %s704 = sshll.u32 %s5, 4
      %s705 = int_to_ptr.hbm [resolvable:$true] %s704
      %707 = dma.vmem_to_hbm [thread:$0]  %s703, 16, %s705, [#allocation5]
    $region33: #{tpu_custom_call.1} parent=1 // pred_fallthru
      _
    // Predicated region
    $region34: #{tpu_custom_call.1} parent=1 // pred_check
      _
    $region35: #{tpu_custom_call.1} parent=1 // pred_check_branch
      %709 = sbr.rel (0) target = $region37
    $region36: #{tpu_custom_call.1} parent=1 // pred_region
      %711 = dma.done [#allocation5], 16
    $region37: #{tpu_custom_call.1} parent=1 // pred_fallthru
      _
    %712 = vsyncpa [#allocation4], 1
    %713 = vsyncpa [#allocation7], 1
    %714 = vsyncpa [#allocation5], 1

</llo_original>
